<compile_context>
chip_gen: v6e
topology: v6e:2x2x1
jax: 0.10.0
libtpu: 0.0.40
codegen_flags: <defaults>
</compile_context>

<pallas_src>
import functools

import jax
import jax.numpy as jnp
from jax.experimental import pallas as pl
from jax.experimental.pallas import tpu as pltpu


def _round_up(n, m):
    return ((n + m - 1) // m) * m


def mlp_kernel(params_ref, x_ref, o_ref):
    # x_ref: (2, R, L) -- feature-major, batch spread over sublanes x lanes.
    x0 = x_ref[0]               # (R, L), dense 8x128 vregs
    x1 = x_ref[1]               # (R, L)

    # params layout (flattened, weights stored [in, out], all pre-scaled by 0.5
    # so that sigmoid(z) == 0.5 + 0.5 * tanh(<pre-scaled pre-activation>)):
    #   [0..3] = w1[0,0], w1[0,1], w1[1,0], w1[1,1]
    #   [4..5] = b1[0], b1[1]
    #   [6..7] = w2[0,0], w2[1,0]
    #   [8]    = b2[0,0]
    w1_00 = params_ref[0]
    w1_01 = params_ref[1]
    w1_10 = params_ref[2]
    w1_11 = params_ref[3]
    b1_0 = params_ref[4]
    b1_1 = params_ref[5]
    w2_0 = params_ref[6]
    w2_1 = params_ref[7]
    b2 = params_ref[8]

    # Layer 1: Linear(2, 2) + Sigmoid.  tanh goes to the EUP (its own bundle
    # slot); everything else is VPU broadcast FMAs.
    h0 = 0.5 + 0.5 * jnp.tanh(x0 * w1_00 + x1 * w1_10 + b1_0)
    h1 = 0.5 + 0.5 * jnp.tanh(x0 * w1_01 + x1 * w1_11 + b1_1)
    # Layer 2: Linear(2, 1) + Sigmoid.
    y = 0.5 + 0.5 * jnp.tanh(h0 * w2_0 + h1 * w2_1 + b2)

    o_ref[...] = y.astype(o_ref.dtype)


@functools.partial(jax.jit, static_argnames=("lane", "block_rows"))
def mlp_forward(x, w1, b1, w2, b2, *, lane=512, block_rows=512):
    """x: [B, 2]; w1: [2, 2] ([in,out]); b1: [1, 2]; w2: [2, 1]; b2: [1, 1] -> [B, 1]."""
    if lane % 128 != 0 or block_rows % 8 != 0:
        raise ValueError("lane must be a multiple of 128 and block_rows a multiple of 8")
    B = x.shape[0]
    dtype = x.dtype

    # Lane width: never wider than the (128-rounded) batch, so a tiny batch is
    # a single padded (8, 128) tile.
    L = min(lane, _round_up(B, 128))
    rows_needed = -(-B // L)
    R = min(block_rows, _round_up(rows_needed, 8))
    # v7x megacore: keep >= 2 grid steps whenever there are >= 2 row-tiles of work.
    if rows_needed > 8 and _round_up(rows_needed, R) // R < 2:
        R = _round_up((rows_needed + 1) // 2, 8)
    rows_pad = _round_up(rows_needed, R)
    n_pad = rows_pad * L
    grid = rows_pad // R

    # Feature-major relayout + tail-only pad (zero-padded rows compute
    # sigmoid(bias) and are sliced off below).
    xf = jnp.pad(x.astype(jnp.float32), ((0, n_pad - B), (0, 0)))
    x_t = xf.T.reshape(2, rows_pad, L)

    # 9 parameters in one flat SMEM array, pre-scaled by 0.5 for the
    # tanh-based sigmoid (no padded VMEM weight tiles, no MXU).
    params = (0.5 * jnp.concatenate(
        [w1.reshape(-1), b1.reshape(-1), w2.reshape(-1), b2.reshape(-1)]
    )).astype(jnp.float32)

    out = pl.pallas_call(
        mlp_kernel,
        out_shape=jax.ShapeDtypeStruct((rows_pad, L), jnp.float32),
        grid=(grid,),
        in_specs=[
            pl.BlockSpec(memory_space=pltpu.MemorySpace.SMEM),   # 9 scalars, whole array
            pl.BlockSpec((2, R, L), lambda i: (0, i, 0)),        # sublane+lane dense x tile
        ],
        out_specs=pl.BlockSpec((R, L), lambda i: (i, 0)),        # dense output tile
        compiler_params=pltpu.CompilerParams(
            dimension_semantics=("parallel",),                   # megacore split on v7x
            vmem_limit_bytes=32 * 1024 * 1024,
        ),
        cost_estimate=pl.CostEstimate(
            flops=18 * n_pad,
            transcendentals=3 * n_pad,
            bytes_accessed=12 * n_pad + 9 * 4,
        ),
    )(params, x_t)

    return out.reshape(-1)[:B].astype(dtype).reshape(B, 1)


def init_params(key):
    """Deterministic parameter init mimicking nn.Linear's U(-1/sqrt(in), 1/sqrt(in))."""
    k1, k2, k3, k4 = jax.random.split(key, 4)
    bound = 1.0 / jnp.sqrt(2.0)  # in_features = 2 for both layers
    # Stored as [in, out] (transposed vs. torch's [out, in]).
    w1 = jax.random.uniform(k1, (2, 2), jnp.float32, -bound, bound)
    b1 = jax.random.uniform(k2, (1, 2), jnp.float32, -bound, bound)
    w2 = jax.random.uniform(k3, (2, 1), jnp.float32, -bound, bound)
    b2 = jax.random.uniform(k4, (1, 1), jnp.float32, -bound, bound)
    return w1, b1, w2, b2


if __name__ == "__main__":
    key = jax.random.PRNGKey(0)
    kx, kx2, kp = jax.random.split(key, 3)
    w1, b1, w2, b2 = init_params(kp)

    # Small batch: single padded (8, 128) tile.
    B = 8
    x = jax.random.normal(kx, (B, 2), jnp.float32)
    out = jax.block_until_ready(mlp_forward(x, w1, b1, w2, b2))
    ref = jax.nn.sigmoid(jax.nn.sigmoid(x @ w1 + b1) @ w2 + b2)
    assert out.shape == (B, 1)
    assert jnp.allclose(out, ref, atol=1e-5, rtol=1e-5)

    # Larger batch: multi-row sublane-dense tiles + padding slice-off.
    B2 = 2500
    x2 = jax.random.normal(kx2, (B2, 2), jnp.float32)
    out2 = jax.block_until_ready(mlp_forward(x2, w1, b1, w2, b2))
    ref2 = jax.nn.sigmoid(jax.nn.sigmoid(x2 @ w1 + b1) @ w2 + b2)
    assert out2.shape == (B2, 1)
    assert jnp.allclose(out2, ref2, atol=1e-5, rtol=1e-5)

    print("KERNEL_OK")
</pallas_src>

<mosaic_0001>
module attributes {stable_mosaic.version = 11 : i64} {
  func.func @mlp_kernel(%arg0: i32, %arg1: memref<9xf32, #tpu.memory_space<smem>>, %arg2: memref<2x8x128xf32, #tpu.memory_space<vmem>>, %arg3: memref<8x128xf32, #tpu.memory_space<vmem>>) attributes {dimension_semantics = [#tpu.dimension_semantics<parallel>], iteration_bounds = array<i64: 1>, scalar_prefetch = 0 : i64, scratch_operands = 0 : i64, tpu.core_type = #tpu.core_type<tc>, window_params = [{transform_indices = @transform_0, window_bounds = array<i64: 9>}, {transform_indices = @transform_1, window_bounds = array<i64: 2, 8, 128>}, {transform_indices = @transform_2, window_bounds = array<i64: 8, 128>}]} {
    %c0 = arith.constant 0 : index
    %c0_0 = arith.constant 0 : index
    %c0_1 = arith.constant 0 : index
    %0 = vector.load %arg2[%c0, %c0_0, %c0_1] : memref<2x8x128xf32, #tpu.memory_space<vmem>>, vector<1x8x128xf32>
    %1 = vector.shape_cast %0 : vector<1x8x128xf32> to vector<8x128xf32>
    %c1 = arith.constant 1 : index
    %c0_2 = arith.constant 0 : index
    %c0_3 = arith.constant 0 : index
    %2 = vector.load %arg2[%c1, %c0_2, %c0_3] : memref<2x8x128xf32, #tpu.memory_space<vmem>>, vector<1x8x128xf32>
    %3 = vector.shape_cast %2 : vector<1x8x128xf32> to vector<8x128xf32>
    %c0_4 = arith.constant 0 : index
    %4 = memref.load %arg1[%c0_4] : memref<9xf32, #tpu.memory_space<smem>>
    %c1_5 = arith.constant 1 : index
    %5 = memref.load %arg1[%c1_5] : memref<9xf32, #tpu.memory_space<smem>>
    %c2 = arith.constant 2 : index
    %6 = memref.load %arg1[%c2] : memref<9xf32, #tpu.memory_space<smem>>
    %c3 = arith.constant 3 : index
    %7 = memref.load %arg1[%c3] : memref<9xf32, #tpu.memory_space<smem>>
    %c4 = arith.constant 4 : index
    %8 = memref.load %arg1[%c4] : memref<9xf32, #tpu.memory_space<smem>>
    %c5 = arith.constant 5 : index
    %9 = memref.load %arg1[%c5] : memref<9xf32, #tpu.memory_space<smem>>
    %c6 = arith.constant 6 : index
    %10 = memref.load %arg1[%c6] : memref<9xf32, #tpu.memory_space<smem>>
    %c7 = arith.constant 7 : index
    %11 = memref.load %arg1[%c7] : memref<9xf32, #tpu.memory_space<smem>>
    %c8 = arith.constant 8 : index
    %12 = memref.load %arg1[%c8] : memref<9xf32, #tpu.memory_space<smem>>
    %13 = vector.broadcast %4 : f32 to vector<8x128xf32>
    %14 = arith.mulf %1, %13 : vector<8x128xf32>
    %15 = vector.broadcast %6 : f32 to vector<8x128xf32>
    %16 = arith.mulf %3, %15 : vector<8x128xf32>
    %17 = arith.addf %14, %16 : vector<8x128xf32>
    %18 = vector.broadcast %8 : f32 to vector<8x128xf32>
    %19 = arith.addf %17, %18 : vector<8x128xf32>
    %20 = math.tanh %19 : vector<8x128xf32>
    %cst = arith.constant 5.000000e-01 : f32
    %21 = vector.broadcast %cst : f32 to vector<8x128xf32>
    %22 = arith.mulf %21, %20 : vector<8x128xf32>
    %cst_6 = arith.constant 5.000000e-01 : f32
    %23 = vector.broadcast %cst_6 : f32 to vector<8x128xf32>
    %24 = arith.addf %23, %22 : vector<8x128xf32>
    %25 = vector.broadcast %5 : f32 to vector<8x128xf32>
    %26 = arith.mulf %1, %25 : vector<8x128xf32>
    %27 = vector.broadcast %7 : f32 to vector<8x128xf32>
    %28 = arith.mulf %3, %27 : vector<8x128xf32>
    %29 = arith.addf %26, %28 : vector<8x128xf32>
    %30 = vector.broadcast %9 : f32 to vector<8x128xf32>
    %31 = arith.addf %29, %30 : vector<8x128xf32>
    %32 = math.tanh %31 : vector<8x128xf32>
    %cst_7 = arith.constant 5.000000e-01 : f32
    %33 = vector.broadcast %cst_7 : f32 to vector<8x128xf32>
    %34 = arith.mulf %33, %32 : vector<8x128xf32>
    %cst_8 = arith.constant 5.000000e-01 : f32
    %35 = vector.broadcast %cst_8 : f32 to vector<8x128xf32>
    %36 = arith.addf %35, %34 : vector<8x128xf32>
    %37 = vector.broadcast %10 : f32 to vector<8x128xf32>
    %38 = arith.mulf %24, %37 : vector<8x128xf32>
    %39 = vector.broadcast %11 : f32 to vector<8x128xf32>
    %40 = arith.mulf %36, %39 : vector<8x128xf32>
    %41 = arith.addf %38, %40 : vector<8x128xf32>
    %42 = vector.broadcast %12 : f32 to vector<8x128xf32>
    %43 = arith.addf %41, %42 : vector<8x128xf32>
    %44 = math.tanh %43 : vector<8x128xf32>
    %cst_9 = arith.constant 5.000000e-01 : f32
    %45 = vector.broadcast %cst_9 : f32 to vector<8x128xf32>
    %46 = arith.mulf %45, %44 : vector<8x128xf32>
    %cst_10 = arith.constant 5.000000e-01 : f32
    %47 = vector.broadcast %cst_10 : f32 to vector<8x128xf32>
    %48 = arith.addf %47, %46 : vector<8x128xf32>
    %c0_11 = arith.constant 0 : index
    %c0_12 = arith.constant 0 : index
    %49 = vector.load %arg3[%c0_11, %c0_12] : memref<8x128xf32, #tpu.memory_space<vmem>>, vector<8x128xf32>
    tpu.vector_store %arg3[%c0_11, %c0_12], %48 {strides = array<i32>} : memref<8x128xf32, #tpu.memory_space<vmem>>, vector<8x128xf32>,
    return
  }
  func.func @transform_0(%arg0: i32) -> i32 {
    %c0_i32 = arith.constant 0 : i32
    %c0_i32_0 = arith.constant 0 : i32
    return %c0_i32 : i32
  }
  func.func @transform_1(%arg0: i32) -> (i32, i32, i32) {
    %c0_i32 = arith.constant 0 : i32
    %c0_i32_0 = arith.constant 0 : i32
    %c0_i32_1 = arith.constant 0 : i32
    return %c0_i32, %arg0, %c0_i32_0 : i32, i32, i32
  }
  func.func @transform_2(%arg0: i32) -> (i32, i32) {
    %c0_i32 = arith.constant 0 : i32
    %c0_i32_0 = arith.constant 0 : i32
    return %arg0, %c0_i32 : i32, i32
  }
}

</mosaic_0001>

<llo_original>
// kernel: mlp_forward.1
$region0: #{mlp_forward.1}
  #allocation0 [shape = 'u32[]', space=smem, size = 0x4, offset = 0x4, fixed_abs, tag = 'smem constant byte address 0x4 - core index']
  #allocation1 [shape = 'u32[144,128]{1,0:T(1,128)}', space=vmem, size = 0x12000, scoped, tag = 'internal scratch']
  %s0 = inlined_call_operand.vmem [shape: f32[9], index: 0, kind: input, shape index: {}]
  %s1 = inlined_call_operand.vmem [shape: f32[2,8,128], index: 1, kind: input, shape index: {}]
  %s2 = inlined_call_operand.vmem [shape: f32[8,128], index: 2, kind: output, shape index: {}]
  %s3 = sld [smem:[#allocation0]]
  $region22: #{mlp_forward.1} parent=0
    _
  %s5 = ssub.s32 1, %s3
  %s6 = scalar_select 0, %s5, %s3
  $region1: #{mlp_forward.1} parent=0
    #allocation2 [shape = 'u8[512]{0}', space=smem, size = 0x200, scoped, tag = 'input window, operand 0, single buffered']
    #allocation3 [shape = 's32[1]{0}', space=sflag, size = 0x4, scoped, tag = 'scoped memory for mlp_forward.1']
    %7 = vsyncpa [#allocation3], 0
    // Predicated region
    $region2: #{mlp_forward.1} parent=1 // pred_check
      _
    $region3: #{mlp_forward.1} parent=1 // pred_check_branch
      %9 = sbr.rel (0) target = $region5
    $region4: #{mlp_forward.1} parent=1 // pred_region
      %s11 = ssub.s32 16, 16
      %12 = vsyncadd [#allocation3], %s11
      %s14 = sshll.u32 %s0, 4
      %s15 = int_to_ptr.vmem [resolvable:$true] %s14
      %17 = dma.vmem_to_smem %s15, 16, [#allocation2], [#allocation3]
    $region5: #{mlp_forward.1} parent=1 // pred_fallthru
      _
    // Predicated region
    $region6: #{mlp_forward.1} parent=1 // pred_check
      _
    $region7: #{mlp_forward.1} parent=1 // pred_check_branch
      %19 = sbr.rel (0) target = $region9
    $region8: #{mlp_forward.1} parent=1 // pred_region
      _
    $region9: #{mlp_forward.1} parent=1 // pred_fallthru
      _
    // Predicated region
    $region10: #{mlp_forward.1} parent=1 // pred_check
      _
    $region11: #{mlp_forward.1} parent=1 // pred_check_branch
      %21 = sbr.rel (0) target = $region13
    $region12: #{mlp_forward.1} parent=1 // pred_region
      %22 = dma.done [#allocation3], 16
    $region13: #{mlp_forward.1} parent=1 // pred_fallthru
      _
    %23 = sfence
    %v24 = vld [vmem:[%s1] sm:$0xff]
    %s25 = scalar_lea.vmem %s1, 8
    %v26 = vld [vmem:[%s25] sm:$0xff]
    %s27 = sld [smem:[#allocation2]]
    %s28 = sld [smem:[#allocation2 + $0x1]]
    %s29 = sld [smem:[#allocation2 + $0x2]]
    %s30 = sld [smem:[#allocation2 + $0x3]]
    %s31 = sld [smem:[#allocation2 + $0x4]]
    %s32 = sld [smem:[#allocation2 + $0x5]]
    %s33 = sld [smem:[#allocation2 + $0x6]]
    %s34 = sld [smem:[#allocation2 + $0x7]]
    %s35 = sld [smem:[#allocation2 + $0x8]]
    %v36 = vstv %s27
    %v37 = vmul.f32 %v24, %v36
    %v38 = vstv %s29
    %v39 = vmul.f32 %v26, %v38
    %v40 = vadd.f32 %v37, %v39
    %v41 = vstv %s31
    %v42 = vadd.f32 %v40, %v41
    %v43 = vtanh.pop %v42
    %v44 = vmul.f32 %v43, 0.5
    %v45 = vadd.f32 %v44, 0.5
    %v46 = vstv %s28
    %v47 = vmul.f32 %v24, %v46
    %v48 = vstv %s30
    %v49 = vmul.f32 %v26, %v48
    %v50 = vadd.f32 %v47, %v49
    %v51 = vstv %s32
    %v52 = vadd.f32 %v50, %v51
    %v53 = vtanh.pop %v52
    %v54 = vmul.f32 %v53, 0.5
    %v55 = vadd.f32 %v54, 0.5
    %v56 = vstv %s33
    %v57 = vmul.f32 %v45, %v56
    %v58 = vstv %s34
    %v59 = vmul.f32 %v55, %v58
    %v60 = vadd.f32 %v57, %v59
    %v61 = vstv %s35
    %v62 = vadd.f32 %v60, %v61
    %v63 = vtanh.pop %v62
    %v64 = vmul.f32 %v63, 0.5
    %v65 = vadd.f32 %v64, 0.5
    %66 = vst [vmem:[%s2] sm:$0xff] %v65
    // Predicated region
    $region14: #{mlp_forward.1} parent=1 // pred_check
      _
    $region15: #{mlp_forward.1} parent=1 // pred_check_branch
      %68 = sbr.rel (0) target = $region17
    $region16: #{mlp_forward.1} parent=1 // pred_region
      _
    $region17: #{mlp_forward.1} parent=1 // pred_fallthru
      _
    // Predicated region
    $region18: #{mlp_forward.1} parent=1 // pred_check
      _
    $region19: #{mlp_forward.1} parent=1 // pred_check_branch
      %70 = sbr.rel (0) target = $region21
    $region20: #{mlp_forward.1} parent=1 // pred_region
      _
    $region21: #{mlp_forward.1} parent=1 // pred_fallthru
      _
    %71 = vsyncpa [#allocation3], 1

</llo_original>
